<compile_context>
chip_gen: v7x
topology: tpu7x:2x2x1
jax: 0.10.0
libtpu: 0.0.40
codegen_flags: <defaults>
</compile_context>

<pallas_src>
import functools

import jax
import jax.numpy as jnp
from jax.experimental import pallas as pl
from jax.experimental.pallas import tpu as pltpu

# Chunk planning constants (static, compile-time).
_GRANULE_ELEMS = 1024            # keep chunk boundaries lane/sublane friendly
_TARGET_CHUNK_BYTES = 4 << 20    # aim ~4 MiB of payload per DMA descriptor
_MAX_CHUNKS_PER_INPUT = 4        # review: K ~ 2-4 is enough to spread engines
_DEFAULT_MIN_PALLAS_BYTES = 1 << 20   # below this, jnp.concatenate is cheaper


def _plan_chunks(inner_len, n_batch, itemsize):
    """Static chunking of one input's flattened inner dim into DMA pieces."""
    total_bytes = n_batch * inner_len * itemsize
    n = max(1, min(_MAX_CHUNKS_PER_INPUT,
                   -(-total_bytes // _TARGET_CHUNK_BYTES)))
    # Each chunk should be at least one granule long.
    n = min(n, max(1, inner_len // _GRANULE_ELEMS))
    step = -(-inner_len // n)
    step = -(-step // _GRANULE_ELEMS) * _GRANULE_ELEMS
    chunks = []
    start = 0
    while start < inner_len:
        size = min(step, inner_len - start)
        chunks.append((start, size))
        start += size
    return chunks


def _concat_dma_kernel(copy_plan, *refs):
    """Concat along channels via direct HBM->HBM DMAs.

    refs = (*in_hbm_refs, out_hbm_ref, dma_sems).  copy_plan is a static
    tuple of (input_idx, in_start, out_start, size) element ranges on the
    flattened (N, C*H*W) layout.  All copies are started first so the DMA
    engines overlap, then all are awaited.
    """
    *in_refs, out_ref, sems = refs
    copies = []
    for j, (ii, in_start, out_start, size) in enumerate(copy_plan):
        copies.append(
            pltpu.make_async_copy(
                in_refs[ii].at[:, in_start:in_start + size],
                out_ref.at[:, out_start:out_start + size],
                sems.at[j],
            ))
    for c in copies:
        c.start()
    for c in copies:
        c.wait()


def correspondence_map_base(x1, x2=None, x3=None,
                            min_pallas_bytes=_DEFAULT_MIN_PALLAS_BYTES):
    """JAX/Pallas equivalent of CorrespondenceMapBase.forward (NCHW inputs).

    Prefer calling under jax.jit so reshapes stay metadata-only.
    """
    inputs = [x for x in (x1, x2, x3) if x is not None]

    # Single input: PyTorch returns x1 (well, a concat of one tensor); under
    # JAX immutability returning x1 itself is equivalent. No kernel launch.
    if len(inputs) == 1:
        return x1

    if x1.ndim != 4:
        raise ValueError(f"expected NCHW 4-D input, got shape {x1.shape}")
    N, _, H, W = x1.shape
    dtype = x1.dtype
    for k, x in enumerate(inputs):
        if x.ndim != 4 or x.shape[0] != N or x.shape[2] != H or x.shape[3] != W:
            raise ValueError(
                f"input {k} shape {x.shape} incompatible with x1 {x1.shape}")
        if x.dtype != dtype:
            raise ValueError(
                f"input {k} dtype {x.dtype} != x1 dtype {dtype} "
                "(torch.cat would also reject this)")

    channel_sizes = tuple(int(x.shape[1]) for x in inputs)
    c_total = sum(channel_sizes)
    itemsize = jnp.dtype(dtype).itemsize
    total_bytes = sum(int(x.size) * itemsize for x in inputs)

    # Tiny problem: launch/descriptor overhead of a custom call dwarfs the
    # copy; let XLA's native concat handle it (and possibly fuse it away).
    if total_bytes < min_pallas_bytes:
        return jnp.concatenate(inputs, axis=1)

    # Free layout plumbing: fully flatten (C_i, H, W) -> C_i*H*W so each DMA
    # descriptor is rank-2 with the largest possible contiguous inner run.
    hw = H * W
    inner_lens = tuple(c * hw for c in channel_sizes)
    flat_inputs = [x.reshape(N, l) for x, l in zip(inputs, inner_lens)]

    # Static copy plan: per input, a few granule-aligned chunks of the
    # flattened inner dim, each landing at its element offset in the output.
    copy_plan = []
    out_off = 0
    for ii, l in enumerate(inner_lens):
        for (start, size) in _plan_chunks(l, N, itemsize):
            copy_plan.append((ii, start, out_off + start, size))
        out_off += l
    copy_plan = tuple(copy_plan)

    kernel = functools.partial(_concat_dma_kernel, copy_plan)

    out_flat = pl.pallas_call(
        kernel,
        out_shape=jax.ShapeDtypeStruct((N, c_total * hw), dtype),
        in_specs=[pl.BlockSpec(memory_space=pl.ANY) for _ in flat_inputs],
        out_specs=pl.BlockSpec(memory_space=pl.ANY),
        scratch_shapes=[pltpu.SemaphoreType.DMA((len(copy_plan),))],
        cost_estimate=pl.CostEstimate(
            flops=0, transcendentals=0, bytes_accessed=2 * total_bytes),
    )(*flat_inputs)

    return out_flat.reshape(N, c_total, H, W)


if __name__ == "__main__":
    key = jax.random.PRNGKey(0)
    k1, k2, k3 = jax.random.split(key, 3)

    # Small NCHW shapes consistent with the module's forward.
    N, H, W = 2, 16, 16
    x1 = jax.random.normal(k1, (N, 4, H, W), dtype=jnp.float32)
    x2 = jax.random.normal(k2, (N, 3, H, W), dtype=jnp.float32)
    x3 = jax.random.normal(k3, (N, 5, H, W), dtype=jnp.float32)

    # Jitted entry points: one that forces the Pallas DMA kernel even at this
    # tiny size (min_pallas_bytes=0), and one with the default threshold that
    # exercises the jnp.concatenate fallback path.
    cmb_pallas = jax.jit(
        functools.partial(correspondence_map_base, min_pallas_bytes=0))
    cmb_default = jax.jit(correspondence_map_base)

    # Case: x2 and x3 both provided -> concat((x1, x2, x3), axis=1).
    out = jax.block_until_ready(cmb_pallas(x1, x2, x3))
    ref = jnp.concatenate([x1, x2, x3], axis=1)
    assert out.shape == (N, 12, H, W)
    assert jnp.array_equal(out, ref)

    # Case: only x2 provided -> concat((x1, x2), axis=1).
    out12 = jax.block_until_ready(cmb_pallas(x1, x2))
    assert jnp.array_equal(out12, jnp.concatenate([x1, x2], axis=1))

    # Case: only x3 provided -> concat((x1, x3), axis=1).
    out13 = jax.block_until_ready(cmb_pallas(x1, None, x3))
    assert jnp.array_equal(out13, jnp.concatenate([x1, x3], axis=1))

    # Case: only x1 -> identity (short-circuited, no kernel launch).
    out1 = jax.block_until_ready(cmb_pallas(x1))
    assert jnp.array_equal(out1, x1)

    # Default threshold: tiny tensors take the jnp.concatenate fallback.
    out_fb = jax.block_until_ready(cmb_default(x1, x2, x3))
    assert jnp.array_equal(out_fb, ref)

    print("KERNEL_OK")
</pallas_src>

<mosaic_0001>
module attributes {stable_mosaic.version = 11 : i64} {
  func.func @_concat_dma_kernel(%arg0: memref<2x1024xf32, #tpu.memory_space<any>>, %arg1: memref<2x768xf32, #tpu.memory_space<any>>, %arg2: memref<2x1280xf32, #tpu.memory_space<any>>, %arg3: memref<2x3072xf32, #tpu.memory_space<any>>, %arg4: memref<3x!tpu.dma_semaphore, #tpu.memory_space<semaphore_mem>>) attributes {dimension_semantics = [], scalar_prefetch = 0 : i64, scratch_operands = 1 : i64, tpu.core_type = #tpu.core_type<tc>} {
    %c0_i32 = arith.constant 0 : i32
    %c0_i32_0 = arith.constant 0 : i32
    %c0_i32_1 = arith.constant 0 : i32
    %0 = tpu.memref_slice %arg0[%c0_i32_0, %c0_i32_1] : memref<2x1024xf32, #tpu.memory_space<any>> -> memref<2x1024xf32, #tpu.memory_space<any>>
    %c0_i32_2 = arith.constant 0 : i32
    %c0_i32_3 = arith.constant 0 : i32
    %1 = tpu.memref_slice %arg3[%c0_i32_2, %c0_i32_3] : memref<2x3072xf32, #tpu.memory_space<any>> -> memref<2x1024xf32, #tpu.memory_space<any>>
    %2 = tpu.memref_slice %arg4[%c0_i32] : memref<3x!tpu.dma_semaphore, #tpu.memory_space<semaphore_mem>> -> memref<1x!tpu.dma_semaphore, #tpu.memory_space<semaphore_mem>>
    %3 = tpu.memref_squeeze %2 : memref<1x!tpu.dma_semaphore, #tpu.memory_space<semaphore_mem>> -> memref<!tpu.dma_semaphore, #tpu.memory_space<semaphore_mem>>
    tpu.enqueue_dma source(%0 : memref<2x1024xf32, #tpu.memory_space<any>>) target(%1 : memref<2x1024xf32, #tpu.memory_space<any>>) target_semaphore(%3 : memref<!tpu.dma_semaphore, #tpu.memory_space<semaphore_mem>>)
    %c1_i32 = arith.constant 1 : i32
    %c0_i32_4 = arith.constant 0 : i32
    %c0_i32_5 = arith.constant 0 : i32
    %4 = tpu.memref_slice %arg1[%c0_i32_4, %c0_i32_5] : memref<2x768xf32, #tpu.memory_space<any>> -> memref<2x768xf32, #tpu.memory_space<any>>
    %c0_i32_6 = arith.constant 0 : i32
    %c1024_i32 = arith.constant 1024 : i32
    %5 = tpu.memref_slice %arg3[%c0_i32_6, %c1024_i32] : memref<2x3072xf32, #tpu.memory_space<any>> -> memref<2x768xf32, #tpu.memory_space<any>>
    %6 = tpu.memref_slice %arg4[%c1_i32] : memref<3x!tpu.dma_semaphore, #tpu.memory_space<semaphore_mem>> -> memref<1x!tpu.dma_semaphore, #tpu.memory_space<semaphore_mem>>
    %7 = tpu.memref_squeeze %6 : memref<1x!tpu.dma_semaphore, #tpu.memory_space<semaphore_mem>> -> memref<!tpu.dma_semaphore, #tpu.memory_space<semaphore_mem>>
    tpu.enqueue_dma source(%4 : memref<2x768xf32, #tpu.memory_space<any>>) target(%5 : memref<2x768xf32, #tpu.memory_space<any>>) target_semaphore(%7 : memref<!tpu.dma_semaphore, #tpu.memory_space<semaphore_mem>>)
    %c2_i32 = arith.constant 2 : i32
    %c0_i32_7 = arith.constant 0 : i32
    %c0_i32_8 = arith.constant 0 : i32
    %8 = tpu.memref_slice %arg2[%c0_i32_7, %c0_i32_8] : memref<2x1280xf32, #tpu.memory_space<any>> -> memref<2x1280xf32, #tpu.memory_space<any>>
    %c0_i32_9 = arith.constant 0 : i32
    %c1792_i32 = arith.constant 1792 : i32
    %9 = tpu.memref_slice %arg3[%c0_i32_9, %c1792_i32] : memref<2x3072xf32, #tpu.memory_space<any>> -> memref<2x1280xf32, #tpu.memory_space<any>>
    %10 = tpu.memref_slice %arg4[%c2_i32] : memref<3x!tpu.dma_semaphore, #tpu.memory_space<semaphore_mem>> -> memref<1x!tpu.dma_semaphore, #tpu.memory_space<semaphore_mem>>
    %11 = tpu.memref_squeeze %10 : memref<1x!tpu.dma_semaphore, #tpu.memory_space<semaphore_mem>> -> memref<!tpu.dma_semaphore, #tpu.memory_space<semaphore_mem>>
    tpu.enqueue_dma source(%8 : memref<2x1280xf32, #tpu.memory_space<any>>) target(%9 : memref<2x1280xf32, #tpu.memory_space<any>>) target_semaphore(%11 : memref<!tpu.dma_semaphore, #tpu.memory_space<semaphore_mem>>)
    %c0_i32_10 = arith.constant 0 : i32
    %c0_i32_11 = arith.constant 0 : i32
    %c0_i32_12 = arith.constant 0 : i32
    %12 = tpu.memref_slice %arg0[%c0_i32_11, %c0_i32_12] : memref<2x1024xf32, #tpu.memory_space<any>> -> memref<2x1024xf32, #tpu.memory_space<any>>
    %c0_i32_13 = arith.constant 0 : i32
    %c0_i32_14 = arith.constant 0 : i32
    %13 = tpu.memref_slice %arg3[%c0_i32_13, %c0_i32_14] : memref<2x3072xf32, #tpu.memory_space<any>> -> memref<2x1024xf32, #tpu.memory_space<any>>
    %14 = tpu.memref_slice %arg4[%c0_i32_10] : memref<3x!tpu.dma_semaphore, #tpu.memory_space<semaphore_mem>> -> memref<1x!tpu.dma_semaphore, #tpu.memory_space<semaphore_mem>>
    %15 = tpu.memref_squeeze %14 : memref<1x!tpu.dma_semaphore, #tpu.memory_space<semaphore_mem>> -> memref<!tpu.dma_semaphore, #tpu.memory_space<semaphore_mem>>
    tpu.wait_dma2 semaphore(%15 : memref<!tpu.dma_semaphore, #tpu.memory_space<semaphore_mem>>) src(%12 : memref<2x1024xf32, #tpu.memory_space<any>>) dst(%13 : memref<2x1024xf32, #tpu.memory_space<any>>)
    %c1_i32_15 = arith.constant 1 : i32
    %c0_i32_16 = arith.constant 0 : i32
    %c0_i32_17 = arith.constant 0 : i32
    %16 = tpu.memref_slice %arg1[%c0_i32_16, %c0_i32_17] : memref<2x768xf32, #tpu.memory_space<any>> -> memref<2x768xf32, #tpu.memory_space<any>>
    %c0_i32_18 = arith.constant 0 : i32
    %c1024_i32_19 = arith.constant 1024 : i32
    %17 = tpu.memref_slice %arg3[%c0_i32_18, %c1024_i32_19] : memref<2x3072xf32, #tpu.memory_space<any>> -> memref<2x768xf32, #tpu.memory_space<any>>
    %18 = tpu.memref_slice %arg4[%c1_i32_15] : memref<3x!tpu.dma_semaphore, #tpu.memory_space<semaphore_mem>> -> memref<1x!tpu.dma_semaphore, #tpu.memory_space<semaphore_mem>>
    %19 = tpu.memref_squeeze %18 : memref<1x!tpu.dma_semaphore, #tpu.memory_space<semaphore_mem>> -> memref<!tpu.dma_semaphore, #tpu.memory_space<semaphore_mem>>
    tpu.wait_dma2 semaphore(%19 : memref<!tpu.dma_semaphore, #tpu.memory_space<semaphore_mem>>) src(%16 : memref<2x768xf32, #tpu.memory_space<any>>) dst(%17 : memref<2x768xf32, #tpu.memory_space<any>>)
    %c2_i32_20 = arith.constant 2 : i32
    %c0_i32_21 = arith.constant 0 : i32
    %c0_i32_22 = arith.constant 0 : i32
    %20 = tpu.memref_slice %arg2[%c0_i32_21, %c0_i32_22] : memref<2x1280xf32, #tpu.memory_space<any>> -> memref<2x1280xf32, #tpu.memory_space<any>>
    %c0_i32_23 = arith.constant 0 : i32
    %c1792_i32_24 = arith.constant 1792 : i32
    %21 = tpu.memref_slice %arg3[%c0_i32_23, %c1792_i32_24] : memref<2x3072xf32, #tpu.memory_space<any>> -> memref<2x1280xf32, #tpu.memory_space<any>>
    %22 = tpu.memref_slice %arg4[%c2_i32_20] : memref<3x!tpu.dma_semaphore, #tpu.memory_space<semaphore_mem>> -> memref<1x!tpu.dma_semaphore, #tpu.memory_space<semaphore_mem>>
    %23 = tpu.memref_squeeze %22 : memref<1x!tpu.dma_semaphore, #tpu.memory_space<semaphore_mem>> -> memref<!tpu.dma_semaphore, #tpu.memory_space<semaphore_mem>>
    tpu.wait_dma2 semaphore(%23 : memref<!tpu.dma_semaphore, #tpu.memory_space<semaphore_mem>>) src(%20 : memref<2x1280xf32, #tpu.memory_space<any>>) dst(%21 : memref<2x1280xf32, #tpu.memory_space<any>>)
    return
  }
}

</mosaic_0001>

<llo_original>
// kernel: correspondence_map_base.1
$region0: #{correspondence_map_base.1}
  #allocation0 [shape = 'u32[]', space=smem, size = 0x4, offset = 0x4, fixed_abs, tag = 'smem constant byte address 0x4 - core index']
  #allocation1 [shape = 'u32[144,128]{1,0:T(1,128)}', space=vmem, size = 0x12000, scoped, tag = 'internal scratch']
  #allocation2 [shape = 's32[3]{0}', space=sflag, size = 0xc, scoped, tag = 'scratch operand']
  #allocation3 [shape = 's32[]', space=sflag, size = 0x4, offset = 0, fixed_abs, tag = 'sflag constant byte address 0x0 - dummy sync flag']
  #allocation4 [shape = 's32[]', space=sflag, size = 0x4, offset = 0, fixed_abs, tag = 'sflag constant byte address 0x0 - dummy sync flag']
  #allocation5 [shape = 's32[]', space=sflag, size = 0x4, offset = 0, fixed_abs, tag = 'sflag constant byte address 0x0 - dummy sync flag']
  %s0 = inlined_call_operand.vmem [shape: f32[2,1024], index: 0, kind: input, shape index: {}]
  %s1 = inlined_call_operand.vmem [shape: f32[2,768], index: 1, kind: input, shape index: {}]
  %s2 = inlined_call_operand.vmem [shape: f32[2,1280], index: 2, kind: input, shape index: {}]
  %s3 = inlined_call_operand.vmem [shape: f32[2,3072], index: 3, kind: output, shape index: {}]
  %s4 = sld [smem:[#allocation0]]
  $region110: #{correspondence_map_base.1} parent=0
    _
  %s6 = ssub.s32 1, %s4
  %s7 = scalar_select 0, %s6, %s4
  %p9 = scmp.lt.u32.totalorder 16, 8
  %p10 = pneg %p9
  // Predicated region
  $region2: #{correspondence_map_base.1} parent=0 // pred_check
    _
  $region3: #{correspondence_map_base.1} parent=0 // pred_check_branch
    %12 = sbr.rel (%p9) target = $region5
  $region4: #{correspondence_map_base.1} parent=0 // pred_region
    %s27 = sand.u32 16, 7
    %p28 = scmp.eq.s32.totalorder %s27, 0
    // Predicated region
    $region17: #{correspondence_map_base.1} parent=4 // pred_check
      %p29 = pneg %p28
    $region18: #{correspondence_map_base.1} parent=4 // pred_check_branch
      %31 = sbr.rel (%p29) target = $region20
    $region19: #{correspondence_map_base.1} parent=4 // pred_region
      loop: start=0, step=1, limit=1
      $region21: #{correspondence_map_base.1} parent=19 // loop_pre_header
        _
      $region22: #{correspondence_map_base.1} parent=19 // loop_header
        %s33 = sphi 0, %s37
        %p34 = scmp.ge.s32.totalorder %s33, 1
        %s38 = sphi %s0, %s0
        %s39 = sphi %s3, %s3
      $region23: #{correspondence_map_base.1} parent=19 // loop_header_branch
        %36 = sbr.rel (%p34) target = $region27
      $region24: #{correspondence_map_base.1} parent=19 // loop_body
        %v40 = vld [vmem:[%s38] sm:$0xff]
        %41 = vst [vmem:[%s39] sm:$0xff] %v40
        %v42 = vld [vmem:[%s38 + $0x8] sm:$0xff]
        %43 = vst [vmem:[%s39 + $0x8] sm:$0xff] %v42
      $region25: #{correspondence_map_base.1} parent=19 // loop_footer
        %s37 = sadd.s32 1, %s33
      $region26: #{correspondence_map_base.1} parent=19 // loop_footer_branch
        %32 = sbr.rel target = $region22
      $region27: #{correspondence_map_base.1} parent=19 // loop_exit
        _
    $region20: #{correspondence_map_base.1} parent=4 // pred_fallthru
      _
    %p44 = pneg %p28
    // Predicated region
    $region28: #{correspondence_map_base.1} parent=4 // pred_check
      _
    $region29: #{correspondence_map_base.1} parent=4 // pred_check_branch
      %46 = sbr.rel (%p28) target = $region31
    $region30: #{correspondence_map_base.1} parent=4 // pred_region
      %s47 = sand.u32 16, 7
    $region31: #{correspondence_map_base.1} parent=4 // pred_fallthru
      _
  $region5: #{correspondence_map_base.1} parent=0 // pred_fallthru
    _
  // Predicated region
  $region6: #{correspondence_map_base.1} parent=0 // pred_check
    %p13 = pneg %p9
  $region7: #{correspondence_map_base.1} parent=0 // pred_check_branch
    %15 = sbr.rel (%p13) target = $region9
  $region8: #{correspondence_map_base.1} parent=0 // pred_region
    %s16 = sshllo.u32 0, 16
    loop: start=0, step=1, limit=1
    $region10: #{correspondence_map_base.1} parent=8 // loop_pre_header
      _
    $region11: #{correspondence_map_base.1} parent=8 // loop_header
      %s18 = sphi 0, %s22
      %p19 = scmp.ge.s32.totalorder %s18, 1
      %s23 = sphi %s0, %s0
      %s24 = sphi %s3, %s3
    $region12: #{correspondence_map_base.1} parent=8 // loop_header_branch
      %21 = sbr.rel (%p19) target = $region16
    $region13: #{correspondence_map_base.1} parent=8 // loop_body
      %v25 = vld [vmem:[%s23] sm:%s16]
      %26 = vst [vmem:[%s24] sm:%s16] %v25
    $region14: #{correspondence_map_base.1} parent=8 // loop_footer
      %s22 = sadd.s32 1, %s18
    $region15: #{correspondence_map_base.1} parent=8 // loop_footer_branch
      %17 = sbr.rel target = $region11
    $region16: #{correspondence_map_base.1} parent=8 // loop_exit
      _
  $region9: #{correspondence_map_base.1} parent=0 // pred_fallthru
    _
  // Predicated region
  $region32: #{correspondence_map_base.1} parent=0 // pred_check
    _
  $region33: #{correspondence_map_base.1} parent=0 // pred_check_branch
    %50 = sbr.rel (0) target = $region35
  $region34: #{correspondence_map_base.1} parent=0 // pred_region
    %51 = vsyncadd [#allocation2], 256
  $region35: #{correspondence_map_base.1} parent=0 // pred_fallthru
    _
  %s52 = scalar_lea.vmem %s3, 16
  %s53 = scalar_lea.sflag [#allocation2], 1
  %p55 = scmp.lt.u32.totalorder 12, 8
  %p56 = pneg %p55
  // Predicated region
  $region36: #{correspondence_map_base.1} parent=0 // pred_check
    _
  $region37: #{correspondence_map_base.1} parent=0 // pred_check_branch
    %58 = sbr.rel (%p55) target = $region39
  $region38: #{correspondence_map_base.1} parent=0 // pred_region
    %s73 = sand.u32 12, 7
    %p74 = scmp.eq.s32.totalorder %s73, 0
    %p75 = pneg %p74
    // Predicated region
    $region51: #{correspondence_map_base.1} parent=38 // pred_check
      _
    $region52: #{correspondence_map_base.1} parent=38 // pred_check_branch
      %77 = sbr.rel (%p74) target = $region54
    $region53: #{correspondence_map_base.1} parent=38 // pred_region
      %s78 = sand.u32 12, 7
      %s79 = ssub.s32 12, %s78
      %s80 = scalar_lea.vmem %s1, %s79
      %s81 = ssub.s32 12, %s78
      %s82 = scalar_lea.vmem %s52, %s81
      loop: start=0, step=1, limit=1
      $region55: #{correspondence_map_base.1} parent=53 // loop_pre_header
        _
      $region56: #{correspondence_map_base.1} parent=53 // loop_header
        %s84 = sphi 0, %s88
        %p85 = scmp.ge.s32.totalorder %s84, 1
        %s89 = sphi %s1, %s1
        %s90 = sphi %s52, %s52
      $region57: #{correspondence_map_base.1} parent=53 // loop_header_branch
        %87 = sbr.rel (%p85) target = $region61
      $region58: #{correspondence_map_base.1} parent=53 // loop_body
        %v91 = vld [vmem:[%s89] sm:$0xff]
        %92 = vst [vmem:[%s90] sm:$0xff] %v91
      $region59: #{correspondence_map_base.1} parent=53 // loop_footer
        %s88 = sadd.s32 1, %s84
      $region60: #{correspondence_map_base.1} parent=53 // loop_footer_branch
        %83 = sbr.rel target = $region56
      $region61: #{correspondence_map_base.1} parent=53 // loop_exit
        _
      %s93 = sshllo.u32 0, %s78
      loop: start=0, step=1, limit=1
      $region62: #{correspondence_map_base.1} parent=53 // loop_pre_header
        _
      $region63: #{correspondence_map_base.1} parent=53 // loop_header
        %s95 = sphi 0, %s99
        %p96 = scmp.ge.s32.totalorder %s95, 1
        %s100 = sphi %s80, %s80
        %s101 = sphi %s82, %s82
      $region64: #{correspondence_map_base.1} parent=53 // loop_header_branch
        %98 = sbr.rel (%p96) target = $region68
      $region65: #{correspondence_map_base.1} parent=53 // loop_body
        %v102 = vld [vmem:[%s100] sm:%s93]
        %103 = vst [vmem:[%s101] sm:%s93] %v102
      $region66: #{correspondence_map_base.1} parent=53 // loop_footer
        %s99 = sadd.s32 1, %s95
      $region67: #{correspondence_map_base.1} parent=53 // loop_footer_branch
        %94 = sbr.rel target = $region63
      $region68: #{correspondence_map_base.1} parent=53 // loop_exit
        _
    $region54: #{correspondence_map_base.1} parent=38 // pred_fallthru
      _
  $region39: #{correspondence_map_base.1} parent=0 // pred_fallthru
    _
  // Predicated region
  $region40: #{correspondence_map_base.1} parent=0 // pred_check
    %p59 = pneg %p55
  $region41: #{correspondence_map_base.1} parent=0 // pred_check_branch
    %61 = sbr.rel (%p59) target = $region43
  $region42: #{correspondence_map_base.1} parent=0 // pred_region
    %s62 = sshllo.u32 0, 12
    loop: start=0, step=1, limit=1
    $region44: #{correspondence_map_base.1} parent=42 // loop_pre_header
      _
    $region45: #{correspondence_map_base.1} parent=42 // loop_header
      %s64 = sphi 0, %s68
      %p65 = scmp.ge.s32.totalorder %s64, 1
      %s69 = sphi %s1, %s1
      %s70 = sphi %s52, %s52
    $region46: #{correspondence_map_base.1} parent=42 // loop_header_branch
      %67 = sbr.rel (%p65) target = $region50
    $region47: #{correspondence_map_base.1} parent=42 // loop_body
      %v71 = vld [vmem:[%s69] sm:%s62]
      %72 = vst [vmem:[%s70] sm:%s62] %v71
    $region48: #{correspondence_map_base.1} parent=42 // loop_footer
      %s68 = sadd.s32 1, %s64
    $region49: #{correspondence_map_base.1} parent=42 // loop_footer_branch
      %63 = sbr.rel target = $region45
    $region50: #{correspondence_map_base.1} parent=42 // loop_exit
      _
  $region43: #{correspondence_map_base.1} parent=0 // pred_fallthru
    _
  // Predicated region
  $region69: #{correspondence_map_base.1} parent=0 // pred_check
    _
  $region70: #{correspondence_map_base.1} parent=0 // pred_check_branch
    %106 = sbr.rel (0) target = $region72
  $region71: #{correspondence_map_base.1} parent=0 // pred_region
    %107 = vsyncadd %s53, 192
  $region72: #{correspondence_map_base.1} parent=0 // pred_fallthru
    _
  %s108 = scalar_lea.vmem %s3, 28
  %s109 = scalar_lea.sflag [#allocation2], 2
  %p111 = scmp.lt.u32.totalorder 20, 8
  %p112 = pneg %p111
  // Predicated region
  $region73: #{correspondence_map_base.1} parent=0 // pred_check
    _
  $region74: #{correspondence_map_base.1} parent=0 // pred_check_branch
    %114 = sbr.rel (%p111) target = $region76
  $region75: #{correspondence_map_base.1} parent=0 // pred_region
    %s129 = sand.u32 20, 7
    %p130 = scmp.eq.s32.totalorder %s129, 0
    %p131 = pneg %p130
    // Predicated region
    $region88: #{correspondence_map_base.1} parent=75 // pred_check
      _
    $region89: #{correspondence_map_base.1} parent=75 // pred_check_branch
      %133 = sbr.rel (%p130) target = $region91
    $region90: #{correspondence_map_base.1} parent=75 // pred_region
      %s134 = sand.u32 20, 7
      %s135 = ssub.s32 20, %s134
      %s136 = scalar_lea.vmem %s2, %s135
      %s137 = ssub.s32 20, %s134
      %s138 = scalar_lea.vmem %s108, %s137
      loop: start=0, step=1, limit=1
      $region92: #{correspondence_map_base.1} parent=90 // loop_pre_header
        _
      $region93: #{correspondence_map_base.1} parent=90 // loop_header
        %s140 = sphi 0, %s144
        %p141 = scmp.ge.s32.totalorder %s140, 1
        %s145 = sphi %s2, %s2
        %s146 = sphi %s108, %s108
      $region94: #{correspondence_map_base.1} parent=90 // loop_header_branch
        %143 = sbr.rel (%p141) target = $region98
      $region95: #{correspondence_map_base.1} parent=90 // loop_body
        %v147 = vld [vmem:[%s145] sm:$0xff]
        %148 = vst [vmem:[%s146] sm:$0xff] %v147
        %v149 = vld [vmem:[%s145 + $0x8] sm:$0xff]
        %150 = vst [vmem:[%s146 + $0x8] sm:$0xff] %v149
      $region96: #{correspondence_map_base.1} parent=90 // loop_footer
        %s144 = sadd.s32 1, %s140
      $region97: #{correspondence_map_base.1} parent=90 // loop_footer_branch
        %139 = sbr.rel target = $region93
      $region98: #{correspondence_map_base.1} parent=90 // loop_exit
        _
      %s151 = sshllo.u32 0, %s134
      loop: start=0, step=1, limit=1
      $region99: #{correspondence_map_base.1} parent=90 // loop_pre_header
        _
      $region100: #{correspondence_map_base.1} parent=90 // loop_header
        %s153 = sphi 0, %s157
        %p154 = scmp.ge.s32.totalorder %s153, 1
        %s158 = sphi %s136, %s136
        %s159 = sphi %s138, %s138
      $region101: #{correspondence_map_base.1} parent=90 // loop_header_branch
        %156 = sbr.rel (%p154) target = $region105
      $region102: #{correspondence_map_base.1} parent=90 // loop_body
        %v160 = vld [vmem:[%s158] sm:%s151]
        %161 = vst [vmem:[%s159] sm:%s151] %v160
      $region103: #{correspondence_map_base.1} parent=90 // loop_footer
        %s157 = sadd.s32 1, %s153
      $region104: #{correspondence_map_base.1} parent=90 // loop_footer_branch
        %152 = sbr.rel target = $region100
      $region105: #{correspondence_map_base.1} parent=90 // loop_exit
        _
    $region91: #{correspondence_map_base.1} parent=75 // pred_fallthru
      _
  $region76: #{correspondence_map_base.1} parent=0 // pred_fallthru
    _
  // Predicated region
  $region77: #{correspondence_map_base.1} parent=0 // pred_check
    %p115 = pneg %p111
  $region78: #{correspondence_map_base.1} parent=0 // pred_check_branch
    %117 = sbr.rel (%p115) target = $region80
  $region79: #{correspondence_map_base.1} parent=0 // pred_region
    %s118 = sshllo.u32 0, 20
    loop: start=0, step=1, limit=1
    $region81: #{correspondence_map_base.1} parent=79 // loop_pre_header
      _
    $region82: #{correspondence_map_base.1} parent=79 // loop_header
      %s120 = sphi 0, %s124
      %p121 = scmp.ge.s32.totalorder %s120, 1
      %s125 = sphi %s2, %s2
      %s126 = sphi %s108, %s108
    $region83: #{correspondence_map_base.1} parent=79 // loop_header_branch
      %123 = sbr.rel (%p121) target = $region87
    $region84: #{correspondence_map_base.1} parent=79 // loop_body
      %v127 = vld [vmem:[%s125] sm:%s118]
      %128 = vst [vmem:[%s126] sm:%s118] %v127
    $region85: #{correspondence_map_base.1} parent=79 // loop_footer
      %s124 = sadd.s32 1, %s120
    $region86: #{correspondence_map_base.1} parent=79 // loop_footer_branch
      %119 = sbr.rel target = $region82
    $region87: #{correspondence_map_base.1} parent=79 // loop_exit
      _
  $region80: #{correspondence_map_base.1} parent=0 // pred_fallthru
    _
  // Predicated region
  $region106: #{correspondence_map_base.1} parent=0 // pred_check
    _
  $region107: #{correspondence_map_base.1} parent=0 // pred_check_branch
    %164 = sbr.rel (0) target = $region109
  $region108: #{correspondence_map_base.1} parent=0 // pred_region
    %165 = vsyncadd %s109, 320
  $region109: #{correspondence_map_base.1} parent=0 // pred_fallthru
    _
  %s166 = smul.u32 2, 1
  %s167 = smul.u32 %s166, 8
  %s168 = sshll.u32 %s167, 4
  %169 = dma.done [#allocation2], %s168
  %s170 = smul.u32 %s166, 6
  %s171 = sshll.u32 %s170, 4
  %172 = dma.done %s53, %s171
  %s173 = smul.u32 %s166, 10
  %s174 = sshll.u32 %s173, 4
  %175 = dma.done %s109, %s174
  %176 = vsyncmov [#allocation2]
  %s177 = vpop.sfrf %176
  %p178 = scmp.eq.s32.totalorder %s177, 0
  %p179 = pneg %p178
  %181 = shalt.err (%p179)
  %s182 = scalar_lea.sflag [#allocation2], 1
  %183 = vsyncmov %s182
  %s184 = vpop.sfrf %183
  %p185 = scmp.eq.s32.totalorder %s184, 0
  %p186 = pneg %p185
  %188 = shalt.err (%p186)
  %s189 = scalar_lea.sflag [#allocation2], 2
  %190 = vsyncmov %s189
  %s191 = vpop.sfrf %190
  %p192 = scmp.eq.s32.totalorder %s191, 0
  %p193 = pneg %p192
  %195 = shalt.err (%p193)

</llo_original>
